<compile_context>
chip_gen: v7x
topology: tpu7x:2x2x1
jax: 0.10.0
libtpu: 0.0.40
codegen_flags: <defaults>
</compile_context>

<pallas_src>
import functools

import jax
import jax.numpy as jnp
from jax import lax
from jax.experimental import pallas as pl
from jax.experimental.pallas import tpu as pltpu

LANE = 128
LOG_CLAMP = -100.0        # torch.nn.BCELoss clamps log terms at -100
TILE_ROWS = 4096          # rows per grid step: 2 MiB f32 per input per buffer
SUB_ROWS = 512            # inner compute sub-chunk (bounds temporaries/vregs)
FAST_PATH_ROWS = 2048     # at/below this (both inputs), skip the grid
NCORES = 2                # leading "parallel" axis; serial no-op on 1-TC chips


def _round_up(x, m):
    return ((x + m - 1) // m) * m


def _single_block_kernel(real_ref, fake_ref, out_ref, *, inv_real, inv_fake):
    real = real_ref[...].astype(jnp.float32)
    fake = fake_ref[...].astype(jnp.float32)
    log_r = jnp.maximum(jnp.log(real), LOG_CLAMP)
    log_1mf = jnp.maximum(jnp.log(1.0 - fake), LOG_CLAMP)
    out_ref[0, 0] = -(jnp.sum(log_r) * inv_real + jnp.sum(log_1mf) * inv_fake)


def _tiled_kernel(real_ref, fake_ref, out_ref, acc_r_ref, acc_f_ref, *,
                  tr, sub, steps, rows_real, rows_fake, inv_real, inv_fake):
    c = pl.program_id(0)   # core / parallel axis
    i = pl.program_id(1)   # reduction axis (arbitrary)

    @pl.when(i == 0)
    def _():
        acc_r_ref[...] = jnp.zeros_like(acc_r_ref)
        acc_f_ref[...] = jnp.zeros_like(acc_f_ref)

    # Logical (unclamped) first slab-row of this grid step.  Rows at/after an
    # input's true row count (tail of a partial block, or clamped re-reads of
    # the last block) are replaced with neutral values before the log.
    base_row = (c * steps + i) * tr
    row_iota = lax.broadcasted_iota(jnp.int32, (sub, LANE), 0)

    def body(k, carry):
        off = pl.multiple_of(k * sub, sub)
        grow = base_row + off + row_iota
        r = real_ref[pl.ds(off, sub), :].astype(jnp.float32)
        f = fake_ref[pl.ds(off, sub), :].astype(jnp.float32)
        r = jnp.where(grow < rows_real, r, 1.0)   # log(1) = 0 for masked rows
        f = jnp.where(grow < rows_fake, f, 0.0)   # log(1-0) = 0 for masked rows
        log_r = jnp.maximum(jnp.log(r), LOG_CLAMP)
        log_1mf = jnp.maximum(jnp.log(1.0 - f), LOG_CLAMP)
        # (sub,128)->(sub/8,8,128) is (8,128)-tile aligned => VPU-only fold.
        acc_r_ref[...] += jnp.sum(log_r.reshape(sub // 8, 8, LANE), axis=0)
        acc_f_ref[...] += jnp.sum(log_1mf.reshape(sub // 8, 8, LANE), axis=0)
        return carry

    lax.fori_loop(0, tr // sub, body, None, unroll=True)

    @pl.when(i == pl.num_programs(1) - 1)
    def _():
        # Raw sums scaled exactly once; final cross-lane reduce happens in the
        # wrapper over a tiny (NCORES, 8, 128) array.
        out_ref[0] = -(acc_r_ref[...] * inv_real + acc_f_ref[...] * inv_fake)


def _to_slab(x, pad_value, min_row_mult=1):
    """Flatten to (rows, 128) in native dtype; copy only if padding is needed."""
    flat = x.reshape(-1)
    n = flat.shape[0]
    rows = _round_up(pl.cdiv(n, LANE), min_row_mult)
    total = rows * LANE
    if total != n:
        # Unavoidable relayout: pad with neutral values (contribute log(1)=0).
        flat = jnp.pad(flat, (0, total - n), constant_values=pad_value)
    return flat.reshape(rows, LANE), rows


def discriminator_loss(real_preds, fake_preds):
    """BCE(real, 1) + BCE(fake, 0); accepts arbitrary shapes / float dtypes."""
    n_real = int(real_preds.size)
    n_fake = int(fake_preds.size)
    inv_real = 1.0 / n_real
    inv_fake = 1.0 / n_fake

    rows_real = pl.cdiv(n_real, LANE)
    rows_fake = pl.cdiv(n_fake, LANE)

    if max(rows_real, rows_fake) <= FAST_PATH_ROWS:
        # Launch/overhead-bound regime: single block, no grid machinery.
        real2d, _ = _to_slab(real_preds, 1.0, min_row_mult=8)
        fake2d, _ = _to_slab(fake_preds, 0.0, min_row_mult=8)
        kernel = functools.partial(
            _single_block_kernel, inv_real=inv_real, inv_fake=inv_fake)
        out = pl.pallas_call(
            kernel,
            out_shape=jax.ShapeDtypeStruct((1, 1), jnp.float32),
            in_specs=[
                pl.BlockSpec(real2d.shape, lambda: (0, 0)),
                pl.BlockSpec(fake2d.shape, lambda: (0, 0)),
            ],
            out_specs=pl.BlockSpec(memory_space=pltpu.MemorySpace.SMEM),
        )(real2d, fake2d)
        return out[0, 0]

    # Mem-bound regime: row-tiled, pipelined, 2-way core-parallel reduction.
    tr, sub = TILE_ROWS, SUB_ROWS
    real2d, rows_real_s = _to_slab(real_preds, 1.0)   # no tile-multiple pad
    fake2d, rows_fake_s = _to_slab(fake_preds, 0.0)
    blk_real = pl.cdiv(rows_real_s, tr)
    blk_fake = pl.cdiv(rows_fake_s, tr)
    steps = pl.cdiv(max(blk_real, blk_fake), NCORES)

    kernel = functools.partial(
        _tiled_kernel, tr=tr, sub=sub, steps=steps,
        rows_real=rows_real_s, rows_fake=rows_fake_s,
        inv_real=inv_real, inv_fake=inv_fake)

    # Clamp each input's block index to its own last block: consecutive
    # repeated indices elide the DMA, and the in-kernel row mask zeroes the
    # (stale) contribution, so the smaller tensor costs no extra bandwidth.
    real_map = lambda c, i: (jnp.minimum(c * steps + i, blk_real - 1), 0)
    fake_map = lambda c, i: (jnp.minimum(c * steps + i, blk_fake - 1), 0)

    out = pl.pallas_call(
        kernel,
        out_shape=jax.ShapeDtypeStruct((NCORES, 8, LANE), jnp.float32),
        grid_spec=pltpu.PrefetchScalarGridSpec(
            num_scalar_prefetch=0,
            grid=(NCORES, steps),
            in_specs=[
                pl.BlockSpec((tr, LANE), real_map),
                pl.BlockSpec((tr, LANE), fake_map),
            ],
            out_specs=pl.BlockSpec((1, 8, LANE), lambda c, i: (c, 0, 0)),
            scratch_shapes=[pltpu.VMEM((8, LANE), jnp.float32),
                            pltpu.VMEM((8, LANE), jnp.float32)],
        ),
        compiler_params=pltpu.CompilerParams(
            dimension_semantics=("parallel", "arbitrary"),
            vmem_limit_bytes=32 * 1024 * 1024),
    )(real2d, fake2d)
    # Tiny final reduce of the per-core (8,128) partials.
    return jnp.sum(out)


def _reference(real_preds, fake_preds):
    # Pure-JAX reference matching torch.nn.BCELoss semantics.
    def bce(pred, target):
        log_p = jnp.maximum(jnp.log(pred), LOG_CLAMP)
        log_1mp = jnp.maximum(jnp.log(1.0 - pred), LOG_CLAMP)
        return jnp.mean(-(target * log_p + (1.0 - target) * log_1mp))

    return bce(real_preds, jnp.ones_like(real_preds)) + bce(
        fake_preds, jnp.zeros_like(fake_preds)
    )


if __name__ == "__main__":
    key = jax.random.PRNGKey(0)
    k1, k2, k3, k4, k5, k6 = jax.random.split(key, 6)

    # 1) Canonical small NCHW discriminator outputs (fast path, zero-copy slab).
    shape_small = (2, 4, 16, 16)
    real_s = jax.nn.sigmoid(jax.random.normal(k1, shape_small, jnp.float32))
    fake_s = jax.nn.sigmoid(jax.random.normal(k2, shape_small, jnp.float32))
    loss_s = jax.block_until_ready(discriminator_loss(real_s, fake_s))
    ref_s = _reference(real_s, fake_s)
    assert jnp.allclose(loss_s, ref_s, rtol=1e-5, atol=1e-5), (loss_s, ref_s)

    # 2) Ragged, differently-shaped real/fake (exercises neutral-value padding
    #    and per-tensor element counts; fast path).
    real_r = jax.nn.sigmoid(jax.random.normal(k3, (3, 1, 30, 30), jnp.float32))
    fake_r = jax.nn.sigmoid(jax.random.normal(k4, (2, 5, 7, 11), jnp.float32))
    loss_r = jax.block_until_ready(discriminator_loss(real_r, fake_r))
    ref_r = _reference(real_r, fake_r)
    assert jnp.allclose(loss_r, ref_r, rtol=1e-5, atol=1e-5), (loss_r, ref_r)

    # 3) Larger, mismatched inputs (tiled path: real = 4 blocks, fake = 3
    #    blocks -> clamped index map, in-kernel tail masking, 2-way parallel
    #    axis, and no wrapper pads since both sizes are multiples of 128).
    real_b = jax.nn.sigmoid(jax.random.normal(k5, (32, 4, 128, 128), jnp.float32))
    fake_b = jax.nn.sigmoid(jax.random.normal(k6, (20, 4, 128, 128), jnp.float32))
    loss_b = jax.block_until_ready(discriminator_loss(real_b, fake_b))
    ref_b = _reference(real_b, fake_b)
    assert jnp.allclose(loss_b, ref_b, rtol=1e-4, atol=1e-4), (loss_b, ref_b)

    print("KERNEL_OK")
</pallas_src>

<mosaic_0001>
module attributes {stable_mosaic.version = 11 : i64} {
  func.func @_single_block_kernel(%arg0: memref<16x128xf32, #tpu.memory_space<vmem>>, %arg1: memref<16x128xf32, #tpu.memory_space<vmem>>, %arg2: memref<1x1xf32, #tpu.memory_space<smem>>) attributes {dimension_semantics = [], scalar_prefetch = 0 : i64, scratch_operands = 0 : i64, tpu.core_type = #tpu.core_type<tc>} {
    %c0 = arith.constant 0 : index
    %c0_0 = arith.constant 0 : index
    %0 = vector.load %arg0[%c0, %c0_0] : memref<16x128xf32, #tpu.memory_space<vmem>>, vector<16x128xf32>
    %c0_1 = arith.constant 0 : index
    %c0_2 = arith.constant 0 : index
    %1 = vector.load %arg1[%c0_1, %c0_2] : memref<16x128xf32, #tpu.memory_space<vmem>>, vector<16x128xf32>
    %2 = math.log %0 : vector<16x128xf32>
    %cst = arith.constant -1.000000e+02 : f32
    %3 = vector.broadcast %cst : f32 to vector<16x128xf32>
    %4 = arith.maximumf %2, %3 : vector<16x128xf32>
    %cst_3 = arith.constant 1.000000e+00 : f32
    %5 = vector.broadcast %cst_3 : f32 to vector<16x128xf32>
    %6 = arith.subf %5, %1 : vector<16x128xf32>
    %7 = math.log %6 : vector<16x128xf32>
    %cst_4 = arith.constant -1.000000e+02 : f32
    %8 = vector.broadcast %cst_4 : f32 to vector<16x128xf32>
    %9 = arith.maximumf %7, %8 : vector<16x128xf32>
    %10 = vector.shape_cast %4 : vector<16x128xf32> to vector<1x16x128xf32>
    %cst_5 = arith.constant dense<0.000000e+00> : vector<1xf32>
    %11 = vector.multi_reduction <add>, %10, %cst_5 [1, 2] : vector<1x16x128xf32> to vector<1xf32>
    %12 = vector.shape_cast %11 : vector<1xf32> to vector<1x1x1xf32>
    %13 = vector.extract %12[0, 0, 0] : f32 from vector<1x1x1xf32>
    %cst_6 = arith.constant 4.8828125E-4 : f32
    %14 = arith.mulf %13, %cst_6 : f32
    %15 = vector.shape_cast %9 : vector<16x128xf32> to vector<1x16x128xf32>
    %cst_7 = arith.constant dense<0.000000e+00> : vector<1xf32>
    %16 = vector.multi_reduction <add>, %15, %cst_7 [1, 2] : vector<1x16x128xf32> to vector<1xf32>
    %17 = vector.shape_cast %16 : vector<1xf32> to vector<1x1x1xf32>
    %18 = vector.extract %17[0, 0, 0] : f32 from vector<1x1x1xf32>
    %cst_8 = arith.constant 4.8828125E-4 : f32
    %19 = arith.mulf %18, %cst_8 : f32
    %20 = arith.addf %14, %19 : f32
    %cst_9 = arith.constant 0.000000e+00 : f32
    %21 = arith.subf %cst_9, %20 : f32
    %c0_10 = arith.constant 0 : index
    %c0_11 = arith.constant 0 : index
    %22 = memref.load %arg2[%c0_10, %c0_11] : memref<1x1xf32, #tpu.memory_space<smem>>
    memref.store %21, %arg2[%c0_10, %c0_11] : memref<1x1xf32, #tpu.memory_space<smem>>
    return
  }
}

</mosaic_0001>

<llo_original>
// kernel: tpu_custom_call.1
$region0: #{tpu_custom_call.1}
  #allocation0 [shape = 'u32[]', space=smem, size = 0x4, offset = 0x4, fixed_abs, tag = 'smem constant byte address 0x4 - core index']
  #allocation1 [shape = 'u32[144,128]{1,0:T(1,128)}', space=vmem, size = 0x12000, scoped, tag = 'internal scratch']
  %s0 = inlined_call_operand.hbm [shape: f32[16,128], index: 0, kind: input, shape index: {}]
  %s1 = inlined_call_operand.hbm [shape: f32[16,128], index: 1, kind: input, shape index: {}]
  %s2 = inlined_call_operand.hbm [shape: f32[1,1], index: 2, kind: output, shape index: {}]
  %s3 = sld [smem:[#allocation0]]
  $region26: #{tpu_custom_call.1} parent=0
    _
  %s5 = ssub.s32 1, %s3
  %s6 = scalar_select 0, %s5, %s3
  $region1: #{tpu_custom_call.1} parent=0
    #allocation2 [shape = 'u8[8192]{0}', space=vmem, size = 0x2000, scoped, tag = 'input window, operand 0, single buffered']
    #allocation3 [shape = 's32[1]{0}', space=sflag, size = 0x4, scoped, tag = 'scoped memory for tpu_custom_call.1']
    #allocation4 [shape = 's32[1]{0}', space=sflag, size = 0x4, scoped, tag = 'scoped memory for tpu_custom_call.1']
    #allocation5 [shape = 'u8[8192]{0}', space=vmem, size = 0x2000, scoped, tag = 'input window, operand 1, single buffered']
    #allocation6 [shape = 's32[1]{0}', space=sflag, size = 0x4, scoped, tag = 'scoped memory for tpu_custom_call.1']
    #allocation7 [shape = 'u8[512]{0}', space=smem, size = 0x200, scoped, tag = 'output window, operand 0, single buffered']
    %7 = vsyncpa [#allocation3], 0
    %8 = vsyncpa [#allocation6], 0
    %9 = vsyncpa [#allocation4], 0
    // Predicated region
    $region2: #{tpu_custom_call.1} parent=1 // pred_check
      _
    $region3: #{tpu_custom_call.1} parent=1 // pred_check_branch
      %11 = sbr.rel (0) target = $region5
    $region4: #{tpu_custom_call.1} parent=1 // pred_region
      %s13 = ssub.s32 256, 256
      %14 = vsyncadd [#allocation3], %s13
      %s15 = sshll.u32 [#allocation2], 4
      %s16 = int_to_ptr.vmem [resolvable:$true] %s15
      %21 = dma.hbm_to_vmem [thread:$0]  %s0, 256, %s16, [#allocation3], 128, 128, 8
    $region5: #{tpu_custom_call.1} parent=1 // pred_fallthru
      _
    // Predicated region
    $region6: #{tpu_custom_call.1} parent=1 // pred_check
      _
    $region7: #{tpu_custom_call.1} parent=1 // pred_check_branch
      %23 = sbr.rel (0) target = $region9
    $region8: #{tpu_custom_call.1} parent=1 // pred_region
      %s25 = ssub.s32 256, 256
      %26 = vsyncadd [#allocation6], %s25
      %s27 = sshll.u32 [#allocation5], 4
      %s28 = int_to_ptr.vmem [resolvable:$true] %s27
      %33 = dma.hbm_to_vmem [thread:$0]  %s1, 256, %s28, [#allocation6], 128, 128, 8
    $region9: #{tpu_custom_call.1} parent=1 // pred_fallthru
      _
    // Predicated region
    $region10: #{tpu_custom_call.1} parent=1 // pred_check
      _
    $region11: #{tpu_custom_call.1} parent=1 // pred_check_branch
      %35 = sbr.rel (0) target = $region13
    $region12: #{tpu_custom_call.1} parent=1 // pred_region
      %36 = dma.done [#allocation3], 256
    $region13: #{tpu_custom_call.1} parent=1 // pred_fallthru
      _
    // Predicated region
    $region14: #{tpu_custom_call.1} parent=1 // pred_check
      _
    $region15: #{tpu_custom_call.1} parent=1 // pred_check_branch
      %38 = sbr.rel (0) target = $region17
    $region16: #{tpu_custom_call.1} parent=1 // pred_region
      %39 = dma.done [#allocation6], 256
    $region17: #{tpu_custom_call.1} parent=1 // pred_fallthru
      _
    %v40 = vld [vmem:[#allocation2] sm:$0xff]
    %v41 = vld [vmem:[#allocation2 + $0x8] sm:$0xff]
    %v42 = vld [vmem:[#allocation5] sm:$0xff]
    %v43 = vld [vmem:[#allocation5 + $0x8] sm:$0xff]
    %v44 = vlog2.pop %v40
    %v45 = vmul.f32 %v44, 0.6931472
    %v46 = vlog2.pop %v41
    %v47 = vmul.f32 %v46, 0.6931472
    %v48 = vmax.f32 %v45, -100.0
    %v49 = vmax.f32 %v47, -100.0
    %v50 = vsub.f32 1.0, %v42
    %v51 = vsub.f32 1.0, %v43
    %v52 = vlog2.pop %v50
    %v53 = vmul.f32 %v52, 0.6931472
    %v54 = vlog2.pop %v51
    %v55 = vmul.f32 %v54, 0.6931472
    %v56 = vmax.f32 %v53, -100.0
    %v57 = vmax.f32 %v55, -100.0
    %v58 = vadd.f32 %v48, %v49
    %59 = vadd.xlane.f32.xlu0 %v58
    %v60 = vpop.xlane.xlu0 %59
    %v61 = vrot.slane %v60, 4
    %v62 = vadd.f32 %v60, %v61
    %v63 = vrot.slane %v62, 2
    %v64 = vadd.f32 %v62, %v63
    %v65 = vrot.slane %v64, 1
    %v66 = vadd.f32 %v64, %v65
    %s67 = vtos %v66
    %s68 = smul.f32 %s67, 0.00048828125
    %v69 = vadd.f32 %v56, %v57
    %70 = vadd.xlane.f32.xlu0 %v69
    %v71 = vpop.xlane.xlu0 %70
    %v72 = vrot.slane %v71, 4
    %v73 = vadd.f32 %v71, %v72
    %v74 = vrot.slane %v73, 2
    %v75 = vadd.f32 %v73, %v74
    %v76 = vrot.slane %v75, 1
    %v77 = vadd.f32 %v75, %v76
    %s78 = vtos %v77
    %s79 = smul.f32 %s78, 0.00048828125
    %s80 = sadd.f32 %s68, %s79
    %s81 = ssub.f32 0.0, %s80
    %s82 = scalar_lea.smem [#allocation7], 0
    %83 = sst [smem:[%s82]] %s81
    // Predicated region
    $region18: #{tpu_custom_call.1} parent=1 // pred_check
      _
    $region19: #{tpu_custom_call.1} parent=1 // pred_check_branch
      %85 = sbr.rel (0) target = $region21
    $region20: #{tpu_custom_call.1} parent=1 // pred_region
      %s87 = ssub.s32 16, 16
      %88 = vsyncadd [#allocation4], %s87
      %91 = dma.smem_to_hbm [#allocation7], 16, %s2, [#allocation4]
    $region21: #{tpu_custom_call.1} parent=1 // pred_fallthru
      _
    // Predicated region
    $region22: #{tpu_custom_call.1} parent=1 // pred_check
      _
    $region23: #{tpu_custom_call.1} parent=1 // pred_check_branch
      %93 = sbr.rel (0) target = $region25
    $region24: #{tpu_custom_call.1} parent=1 // pred_region
      %94 = dma.done [#allocation4], 16
    $region25: #{tpu_custom_call.1} parent=1 // pred_fallthru
      _
    %95 = sfence
    %96 = vsyncpa [#allocation3], 1
    %97 = vsyncpa [#allocation6], 1
    %98 = vsyncpa [#allocation4], 1

</llo_original>
